<compile_context>
chip_gen: v5e
topology: v5e:2x2
jax: 0.10.0
libtpu: 0.0.40
codegen_flags: <defaults>
</compile_context>

<pallas_src>
import functools

import jax
import jax.numpy as jnp
import numpy as np
from jax.experimental import pallas as pl
from jax.experimental.pallas import tpu as pltpu


_VMEM_DATA_BUDGET = 24 * 1024 * 1024   # bytes for kernel buffers (tk selection)
_VMEM_LIMIT_BYTES = 48 * 1024 * 1024   # scoped VMEM limit (< v7x 64 MiB physical)
_MAX_TK = 2048                         # cap on the reduction tile width


def _gram_kernel(*refs, scale, with_loss):
    """One K-tile of G = scale * X @ X.T, accumulated over the grid axis.

    On the last grid step the gram is written out and (optionally) the sum of
    squared differences against the target gram is written to SMEM.
    """
    if with_loss:
        x_ref, tgt_ref, g_ref, loss_ref, acc_ref = refs
    else:
        x_ref, g_ref, acc_ref = refs
        tgt_ref = loss_ref = None

    k = pl.program_id(0)

    @pl.when(k == 0)
    def _():
        acc_ref[...] = jnp.zeros_like(acc_ref)

    x = x_ref[...]
    # Contract over the last dim of both operands: MXU consumes the
    # transposed RHS natively, no explicit transpose needed.
    acc_ref[...] += jax.lax.dot_general(
        x, x,
        dimension_numbers=(((1,), (1,)), ((), ())),
        preferred_element_type=jnp.float32,
    )

    @pl.when(k == pl.num_programs(0) - 1)
    def _():
        g = acc_ref[...] * scale
        g_ref[...] = g.astype(g_ref.dtype)
        if with_loss:
            d = g - tgt_ref[...].astype(jnp.float32)
            loss_ref[0, 0] = jnp.sum(d * d)


def _pick_tk(M, K, itemsize, with_loss):
    """Largest multiple-of-128 reduction tile that fits the VMEM budget."""
    # Fixed VMEM: f32 accumulator + double-buffered G output (+ target block).
    fixed = (1 + 2 + (2 if with_loss else 0)) * M * M * 4
    k_ceil = -(-K // 128) * 128
    tk = max(128, min(_MAX_TK, k_ceil))
    tk = (tk // 128) * 128
    while tk > 128 and 2 * M * tk * itemsize + fixed > _VMEM_DATA_BUDGET:
        tk -= 128
    return tk


def _gram_pallas(feats, target_gram=None, *, compute_dtype=jnp.float32):
    """feats: (M, K). Returns G (f32), or (G, sum_sq_err) if target_gram given."""
    M, K = feats.shape
    scale = 1.0 / float(M * K)          # original (unpadded) element count
    with_loss = target_gram is not None

    x = feats.astype(compute_dtype)
    itemsize = jnp.dtype(compute_dtype).itemsize
    tk = _pick_tk(M, K, itemsize, with_loss)
    k_pad = -(-K // tk) * tk
    if k_pad != K:
        # Zero columns contribute nothing to X @ X.T.
        x = jnp.pad(x, ((0, 0), (0, k_pad - K)))
    num_k = k_pad // tk

    in_specs = [pl.BlockSpec((M, tk), lambda k: (0, k))]
    inputs = [x]
    if with_loss:
        in_specs.append(pl.BlockSpec((M, M), lambda k: (0, 0)))
        inputs.append(target_gram.astype(jnp.float32))
        out_shape = (
            jax.ShapeDtypeStruct((M, M), jnp.float32),
            jax.ShapeDtypeStruct((1, 1), jnp.float32),
        )
        out_specs = (
            pl.BlockSpec((M, M), lambda k: (0, 0)),
            pl.BlockSpec(memory_space=pltpu.SMEM),
        )
    else:
        out_shape = jax.ShapeDtypeStruct((M, M), jnp.float32)
        out_specs = pl.BlockSpec((M, M), lambda k: (0, 0))

    outs = pl.pallas_call(
        functools.partial(_gram_kernel, scale=scale, with_loss=with_loss),
        out_shape=out_shape,
        grid_spec=pltpu.PrefetchScalarGridSpec(
            num_scalar_prefetch=0,
            grid=(num_k,),
            in_specs=in_specs,
            out_specs=out_specs,
            scratch_shapes=[pltpu.VMEM((M, M), jnp.float32)],
        ),
        compiler_params=pltpu.CompilerParams(
            # Single grid axis is the K reduction -> sequential.
            dimension_semantics=("arbitrary",),
            vmem_limit_bytes=_VMEM_LIMIT_BYTES,
        ),
    )(*inputs)

    if with_loss:
        g, sq = outs
        return g, sq[0, 0]
    return outs


def _flatten_features(x):
    B, H, W, F = x.shape
    return x.reshape(B * H, W * F)      # matches torch .view(B*H, W*F)


def gram_matrix(x, *, compute_dtype=jnp.float32):
    return _gram_pallas(_flatten_features(x), compute_dtype=compute_dtype)


def gram_and_mse_loss(x, target_gram, *, compute_dtype=jnp.float32):
    feats = _flatten_features(x)
    M = feats.shape[0]
    g, sq_sum = _gram_pallas(feats, target_gram, compute_dtype=compute_dtype)
    return g, sq_sum / jnp.float32(M * M)


class StyleLoss:
    """JAX/Pallas port of the PyTorch StyleLoss module (forward pass)."""

    def __init__(self, target_feature, *, compute_dtype=jnp.float32):
        self.compute_dtype = compute_dtype
        # Gram-only path: no zero-target allocation / MSE work during setup.
        self.target = gram_matrix(jnp.asarray(target_feature, jnp.float32),
                                  compute_dtype=compute_dtype)
        # F.mse_loss(target, target) == 0 by construction.
        self.loss = jnp.float32(0.0)

    def forward_with_loss(self, x):
        """Functional forward (jit-safe): returns (x, loss)."""
        _g, loss = gram_and_mse_loss(jnp.asarray(x, jnp.float32), self.target,
                                     compute_dtype=self.compute_dtype)
        return x, loss

    def __call__(self, x):
        # Stateful API parity with the PyTorch module (self.loss side effect);
        # use forward_with_loss under jit.
        out, self.loss = self.forward_with_loss(x)
        return out


def _gram_ref(x):
    B, H, W, F = x.shape
    f = x.reshape(B * H, W * F).astype(jnp.float32)
    return (f @ f.T) / float(B * H * W * F)


if __name__ == "__main__":
    # B=2, H=16, W=16, F=16 -> features (32, 256), gram (32, 32).
    key = jax.random.PRNGKey(0)
    k_tgt, k_in = jax.random.split(key)
    target_feature = jax.random.normal(k_tgt, (2, 16, 16, 16), dtype=jnp.float32)
    x = jax.random.normal(k_in, (2, 16, 16, 16), dtype=jnp.float32)

    module = StyleLoss(target_feature)
    out = jax.block_until_ready(module(x))
    loss = jax.block_until_ready(module.loss)

    # Pure-JAX reference check (f32 path).
    tgt_ref = _gram_ref(target_feature)
    g_ref = _gram_ref(x)
    loss_ref = jnp.mean((g_ref - tgt_ref) ** 2)

    np.testing.assert_allclose(np.asarray(module.target), np.asarray(tgt_ref),
                               rtol=1e-5, atol=1e-5)
    np.testing.assert_allclose(np.asarray(loss), np.asarray(loss_ref),
                               rtol=1e-5, atol=1e-6)
    np.testing.assert_allclose(np.asarray(out), np.asarray(x))

    # Optional bf16 streaming path (halves HBM traffic; f32 MXU accumulation).
    module_bf16 = StyleLoss(target_feature, compute_dtype=jnp.bfloat16)
    _ = jax.block_until_ready(module_bf16(x))
    loss_bf16 = jax.block_until_ready(module_bf16.loss)
    np.testing.assert_allclose(np.asarray(loss_bf16), np.asarray(loss_ref),
                               rtol=5e-2, atol=1e-6)

    print("KERNEL_OK")
</pallas_src>

<mosaic_0001>
module attributes {stable_mosaic.version = 11 : i64} {
  func.func @_gram_kernel(%arg0: i32, %arg1: memref<32x256xf32, #tpu.memory_space<vmem>>, %arg2: memref<32x32xf32, #tpu.memory_space<vmem>>, %arg3: memref<32x32xf32, #tpu.memory_space<vmem>>) attributes {dimension_semantics = [#tpu.dimension_semantics<arbitrary>], iteration_bounds = array<i64: 1>, scalar_prefetch = 0 : i64, scratch_operands = 1 : i64, tpu.core_type = #tpu.core_type<tc>, window_params = [{transform_indices = @transform_0, window_bounds = array<i64: 32, 256>}, {pipeline_mode = #tpu.pipeline_mode<synchronous>, transform_indices = @transform_1, window_bounds = array<i64: 32, 32>}]} {
    %c0_i32 = arith.constant 0 : i32
    %0 = arith.cmpi eq, %arg0, %c0_i32 : i32
    %1 = arith.extui %0 : i1 to i32
    %c0_i32_0 = arith.constant 0 : i32
    %2 = arith.cmpi ne, %1, %c0_i32_0 : i32
    scf.if %2 {
      %cst_8 = arith.constant 0.000000e+00 : f32
      %11 = vector.broadcast %cst_8 : f32 to vector<32x32xf32>
      %c0_9 = arith.constant 0 : index
      %c0_10 = arith.constant 0 : index
      %12 = vector.load %arg3[%c0_9, %c0_10] : memref<32x32xf32, #tpu.memory_space<vmem>>, vector<32x32xf32>
      tpu.vector_store %arg3[%c0_9, %c0_10], %11 {strides = array<i32>} : memref<32x32xf32, #tpu.memory_space<vmem>>, vector<32x32xf32>,
    } else {
    }
    %c0 = arith.constant 0 : index
    %c0_1 = arith.constant 0 : index
    %3 = vector.load %arg1[%c0, %c0_1] : memref<32x256xf32, #tpu.memory_space<vmem>>, vector<32x256xf32>
    %c0_2 = arith.constant 0 : index
    %c0_3 = arith.constant 0 : index
    %4 = vector.load %arg3[%c0_2, %c0_3] : memref<32x32xf32, #tpu.memory_space<vmem>>, vector<32x32xf32>
    %cst = arith.constant dense<0.000000e+00> : vector<32x32xf32>
    %5 = tpu.matmul %3, %3, %cst {dimension_numbers = #tpu.dot_dimension_numbers<[1], [1], [0], [0], [0, 0, 1, 0], [], []>} : vector<32x256xf32>, vector<32x256xf32>, vector<32x32xf32> -> vector<32x32xf32>
    %6 = arith.addf %4, %5 : vector<32x32xf32>
    %c0_4 = arith.constant 0 : index
    %c0_5 = arith.constant 0 : index
    %7 = vector.load %arg3[%c0_4, %c0_5] : memref<32x32xf32, #tpu.memory_space<vmem>>, vector<32x32xf32>
    tpu.vector_store %arg3[%c0_4, %c0_5], %6 {strides = array<i32>} : memref<32x32xf32, #tpu.memory_space<vmem>>, vector<32x32xf32>,
    %c0_i32_6 = arith.constant 0 : i32
    %8 = arith.cmpi eq, %arg0, %c0_i32_6 : i32
    %9 = arith.extui %8 : i1 to i32
    %c0_i32_7 = arith.constant 0 : i32
    %10 = arith.cmpi ne, %9, %c0_i32_7 : i32
    scf.if %10 {
      %c0_8 = arith.constant 0 : index
      %c0_9 = arith.constant 0 : index
      %11 = vector.load %arg3[%c0_8, %c0_9] : memref<32x32xf32, #tpu.memory_space<vmem>>, vector<32x32xf32>
      %cst_10 = arith.constant 1.22070313E-4 : f32
      %12 = vector.broadcast %cst_10 : f32 to vector<32x32xf32>
      %13 = arith.mulf %11, %12 : vector<32x32xf32>
      %c0_11 = arith.constant 0 : index
      %c0_12 = arith.constant 0 : index
      %14 = vector.load %arg2[%c0_11, %c0_12] : memref<32x32xf32, #tpu.memory_space<vmem>>, vector<32x32xf32>
      tpu.vector_store %arg2[%c0_11, %c0_12], %13 {strides = array<i32>} : memref<32x32xf32, #tpu.memory_space<vmem>>, vector<32x32xf32>,
    } else {
    }
    return
  }
  func.func @transform_0(%arg0: i32) -> (i32, i32) {
    %c0_i32 = arith.constant 0 : i32
    %c0_i32_0 = arith.constant 0 : i32
    return %c0_i32, %arg0 : i32, i32
  }
  func.func @transform_1(%arg0: i32) -> (i32, i32) {
    %c0_i32 = arith.constant 0 : i32
    %c0_i32_0 = arith.constant 0 : i32
    %c0_i32_1 = arith.constant 0 : i32
    return %c0_i32, %c0_i32_0 : i32, i32
  }
}

</mosaic_0001>

<llo_original>
// kernel: tpu_custom_call.1
$region0: #{tpu_custom_call.1}
  #allocation0 [shape = 'u32[]', space=smem, size = 0x4, offset = 0x4, fixed_abs, tag = 'smem constant byte address 0x4 - core index']
  #allocation1 [shape = 'u32[72,128]{1,0:T(1,128)}', space=vmem, size = 0x9000, scoped, tag = 'internal scratch']
  #allocation2 [shape = 'f32[32,32]{1,0:T(8,128)}', space=vmem, size = 0x4000, scoped, tag = 'scratch operand']
  %s0 = inlined_call_operand.hbm [shape: f32[32,256], index: 0, kind: input, shape index: {}]
  %s1 = inlined_call_operand.hbm [shape: f32[32,32], index: 1, kind: output, shape index: {}]
  %s2 = sld [smem:[#allocation0]]
  $region26: #{tpu_custom_call.1} parent=0
    _
  %s4 = ssub.s32 1, %s2
  %s5 = scalar_select 0, %s4, %s2
  $region1: #{tpu_custom_call.1} parent=0
    #allocation3 [shape = 'u8[32768]{0}', space=vmem, size = 0x8000, scoped, tag = 'input window, operand 0, single buffered']
    #allocation4 [shape = 's32[1]{0}', space=sflag, size = 0x4, scoped, tag = 'scoped memory for tpu_custom_call.1']
    #allocation5 [shape = 's32[1]{0}', space=sflag, size = 0x4, scoped, tag = 'scoped memory for tpu_custom_call.1']
    #allocation6 [shape = 'u8[16384]{0}', space=vmem, size = 0x4000, scoped, tag = 'output window, operand 0, single buffered']
    %6 = vsyncpa [#allocation4], 0
    %7 = vsyncpa [#allocation5], 0
    // Predicated region
    $region2: #{tpu_custom_call.1} parent=1 // pred_check
      _
    $region3: #{tpu_custom_call.1} parent=1 // pred_check_branch
      %9 = sbr.rel (0) target = $region5
    $region4: #{tpu_custom_call.1} parent=1 // pred_region
      %11 = vsyncadd [#allocation4], 0
      %s12 = sshll.u32 %s0, 4
      %s13 = int_to_ptr.hbm [resolvable:$true] %s12
      %s14 = sshll.u32 [#allocation3], 4
      %s15 = int_to_ptr.vmem [resolvable:$true] %s14
      %20 = dma.hbm_to_vmem [thread:$0]  %s13, 1024, %s15, [#allocation4], 256, 256, 16
    $region5: #{tpu_custom_call.1} parent=1 // pred_fallthru
      _
    // Predicated region
    $region6: #{tpu_custom_call.1} parent=1 // pred_check
      _
    $region7: #{tpu_custom_call.1} parent=1 // pred_check_branch
      %22 = sbr.rel (0) target = $region9
    $region8: #{tpu_custom_call.1} parent=1 // pred_region
      %24 = dma.done [#allocation4], 1024
    $region9: #{tpu_custom_call.1} parent=1 // pred_fallthru
      _
    %p25 = scmp.eq.s32.totalorder 0, 0
    // Predicated region
    $region10: #{tpu_custom_call.1} parent=1 // pred_check
      %p26 = pneg %p25
    $region11: #{tpu_custom_call.1} parent=1 // pred_check_branch
      %28 = sbr.rel (%p26) target = $region13
    $region12: #{tpu_custom_call.1} parent=1 // pred_region
      %vm29 = vcmask 261120
      %30 = vst.msk [vmem:[#allocation2] sm:$0xff] %vm29, 0.0
      %31 = vst.msk [vmem:[#allocation2 + $0x8] sm:$0xff] %vm29, 0.0
      %32 = vst.msk [vmem:[#allocation2 + $0x10] sm:$0xff] %vm29, 0.0
      %33 = vst.msk [vmem:[#allocation2 + $0x18] sm:$0xff] %vm29, 0.0
    $region13: #{tpu_custom_call.1} parent=1 // pred_fallthru
      _
    %v34 = vld [vmem:[#allocation3] sm:$0xff]
    %v35 = vld [vmem:[#allocation3 + $0x8] sm:$0xff]
    %v36 = vld [vmem:[#allocation3 + $0x10] sm:$0xff]
    %v37 = vld [vmem:[#allocation3 + $0x18] sm:$0xff]
    %v38 = vld [vmem:[#allocation3 + $0x20] sm:$0xff]
    %v39 = vld [vmem:[#allocation3 + $0x28] sm:$0xff]
    %v40 = vld [vmem:[#allocation3 + $0x30] sm:$0xff]
    %v41 = vld [vmem:[#allocation3 + $0x38] sm:$0xff]
    %v42 = vld [vmem:[#allocation2] sm:$0xff]
    %v43 = vld [vmem:[#allocation2 + $0x8] sm:$0xff]
    %v44 = vld [vmem:[#allocation2 + $0x10] sm:$0xff]
    %v45 = vld [vmem:[#allocation2 + $0x18] sm:$0xff]
    %46 = vmatpush.xpose.msra.mxu0 0.0
    %47 = vmatpush.xpose.msra.mxu0 0.0
    %48 = vmatpush.xpose.msra.mxu0 0.0
    %49 = vmatpush.xpose.msra.mxu0 0.0
    %50 = vmatpush.xpose.msra.mxu0 0.0
    %51 = vmatpush.xpose.msra.mxu0 0.0
    %52 = vmatpush.xpose.msra.mxu0 0.0
    %53 = vmatpush.xpose.msra.mxu0 0.0
    %54 = vmatpush.xpose.msra.mxu0 0.0
    %55 = vmatpush.xpose.msra.mxu0 0.0
    %56 = vmatpush.xpose.msra.mxu0 0.0
    %57 = vmatpush.xpose.msra.mxu0 0.0
    %58 = vmatpush.xpose.msra.mxu0 %v40
    %59 = vmatpush.xpose.msra.mxu0 %v38
    %60 = vmatpush.xpose.msra.mxu0 %v36
    %61 = vmatpush.xpose.msra.mxu0 %v34
    %62 = vmatmul.f32.gmra.mxu0 %v34
    %v63 = vpop.f32.mrf.mxu0
    %v64 = vadd.f32 0.0, %v63
    %65 = vmatmul.f32.gmra.mxu0 %v36
    %v66 = vpop.f32.mrf.mxu0
    %v67 = vadd.f32 0.0, %v66
    %68 = vmatmul.f32.gmra.mxu0 %v38
    %v69 = vpop.f32.mrf.mxu0
    %v70 = vadd.f32 0.0, %v69
    %71 = vmatmul.f32.gmra.mxu0 %v40
    %v72 = vpop.f32.mrf.mxu0
    %v73 = vadd.f32 0.0, %v72
    %74 = vdwg.mxu0
    %75 = vmatpush.xpose.msra.mxu0 0.0
    %76 = vmatpush.xpose.msra.mxu0 0.0
    %77 = vmatpush.xpose.msra.mxu0 0.0
    %78 = vmatpush.xpose.msra.mxu0 0.0
    %79 = vmatpush.xpose.msra.mxu0 0.0
    %80 = vmatpush.xpose.msra.mxu0 0.0
    %81 = vmatpush.xpose.msra.mxu0 0.0
    %82 = vmatpush.xpose.msra.mxu0 0.0
    %83 = vmatpush.xpose.msra.mxu0 0.0
    %84 = vmatpush.xpose.msra.mxu0 0.0
    %85 = vmatpush.xpose.msra.mxu0 0.0
    %86 = vmatpush.xpose.msra.mxu0 0.0
    %87 = vmatpush.xpose.msra.mxu0 %v41
    %88 = vmatpush.xpose.msra.mxu0 %v39
    %89 = vmatpush.xpose.msra.mxu0 %v37
    %90 = vmatpush.xpose.msra.mxu0 %v35
    %91 = vmatmul.f32.gmra.mxu0 %v35
    %v92 = vpop.f32.mrf.mxu0
    %v93 = vadd.f32 %v64, %v92
    %94 = vmatmul.f32.gmra.mxu0 %v37
    %v95 = vpop.f32.mrf.mxu0
    %v96 = vadd.f32 %v67, %v95
    %97 = vmatmul.f32.gmra.mxu0 %v39
    %v98 = vpop.f32.mrf.mxu0
    %v99 = vadd.f32 %v70, %v98
    %100 = vmatmul.f32.gmra.mxu0 %v41
    %v101 = vpop.f32.mrf.mxu0
    %v102 = vadd.f32 %v73, %v101
    %103 = vdwg.mxu0
    %v104 = vadd.f32 %v42, %v93
    %v105 = vadd.f32 %v43, %v96
    %v106 = vadd.f32 %v44, %v99
    %v107 = vadd.f32 %v45, %v102
    %vm108 = vcmask 261120
    %109 = vst.msk [vmem:[#allocation2] sm:$0xff] %vm108, %v104
    %110 = vst.msk [vmem:[#allocation2 + $0x8] sm:$0xff] %vm108, %v105
    %111 = vst.msk [vmem:[#allocation2 + $0x10] sm:$0xff] %vm108, %v106
    %112 = vst.msk [vmem:[#allocation2 + $0x18] sm:$0xff] %vm108, %v107
    // Predicated region
    $region14: #{tpu_custom_call.1} parent=1 // pred_check
      %p113 = pneg %p25
    $region15: #{tpu_custom_call.1} parent=1 // pred_check_branch
      %115 = sbr.rel (%p113) target = $region17
    $region16: #{tpu_custom_call.1} parent=1 // pred_region
      %v116 = vld [vmem:[#allocation2] sm:$0xff]
      %v117 = vld [vmem:[#allocation2 + $0x8] sm:$0xff]
      %v118 = vld [vmem:[#allocation2 + $0x10] sm:$0xff]
      %v119 = vld [vmem:[#allocation2 + $0x18] sm:$0xff]
      %v120 = vmul.f32 %v116, 0.00012207031
      %v121 = vmul.f32 %v117, 0.00012207031
      %v122 = vmul.f32 %v118, 0.00012207031
      %v123 = vmul.f32 %v119, 0.00012207031
      %124 = vst.msk [vmem:[#allocation6] sm:$0xff] %vm108, %v120
      %125 = vst.msk [vmem:[#allocation6 + $0x8] sm:$0xff] %vm108, %v121
      %126 = vst.msk [vmem:[#allocation6 + $0x10] sm:$0xff] %vm108, %v122
      %127 = vst.msk [vmem:[#allocation6 + $0x18] sm:$0xff] %vm108, %v123
    $region17: #{tpu_custom_call.1} parent=1 // pred_fallthru
      _
    // Predicated region
    $region18: #{tpu_custom_call.1} parent=1 // pred_check
      _
    $region19: #{tpu_custom_call.1} parent=1 // pred_check_branch
      %129 = sbr.rel (0) target = $region21
    $region20: #{tpu_custom_call.1} parent=1 // pred_region
      %131 = vsyncadd [#allocation5], 0
      %s132 = sshll.u32 [#allocation6], 4
      %s133 = int_to_ptr.vmem [resolvable:$true] %s132
      %s134 = sshll.u32 %s1, 4
      %s135 = int_to_ptr.hbm [resolvable:$true] %s134
      %140 = dma.vmem_to_hbm [thread:$0]  %s133, 512, %s135, [#allocation5], 128, 128, 8
    $region21: #{tpu_custom_call.1} parent=1 // pred_fallthru
      _
    // Predicated region
    $region22: #{tpu_custom_call.1} parent=1 // pred_check
      _
    $region23: #{tpu_custom_call.1} parent=1 // pred_check_branch
      %142 = sbr.rel (0) target = $region25
    $region24: #{tpu_custom_call.1} parent=1 // pred_region
      %144 = dma.done [#allocation5], 512
    $region25: #{tpu_custom_call.1} parent=1 // pred_fallthru
      _
    %145 = vsyncpa [#allocation4], 1
    %146 = vsyncpa [#allocation5], 1

</llo_original>
